<compile_context>
chip_gen: v7x
topology: tpu7x:2x2x1
jax: 0.10.0
libtpu: 0.0.40
codegen_flags: <defaults>
</compile_context>

<pallas_src>
import math

import jax
import jax.numpy as jnp
from jax.experimental import pallas as pl
from jax.experimental.pallas import tpu as pltpu


def _ddpm_forward_kernel(s_ref, x_ref, eta_ref, out_ref):
    # s_ref : (Bt, 2) f32 per-sample scales; col 0 = sqrt(a_bar[t]),
    #         col 1 = sqrt(1 - a_bar[t]).  Broadcast over lanes.
    # x_ref / eta_ref / out_ref : (Bt, D) lane-dense tiles.
    s = s_ref[...]
    sa = s[:, 0:1]
    sb = s[:, 1:2]
    x = x_ref[...].astype(jnp.float32)
    e = eta_ref[...].astype(jnp.float32)
    out_ref[...] = (sa * x + sb * e).astype(out_ref.dtype)


def make_ddpm_schedule(n_steps=200, min_beta=1e-4, max_beta=0.02):
    betas = jnp.linspace(min_beta, max_beta, n_steps, dtype=jnp.float32)
    alphas = 1.0 - betas
    alpha_bars = jnp.cumprod(alphas)  # == prod(alphas[:i+1]) for each i
    return betas, alphas, alpha_bars


def _sublane_multiple(dtype):
    # Sublane packing: 8 rows per vreg for 32-bit, 16 for 16-bit, 32 for 8-bit.
    return max(8, 32 // jnp.dtype(dtype).itemsize)


def _rows_per_block(n, bytes_per_row, target_tile_bytes, sub):
    """Rows per grid step: ~target bytes per input tile, sublane-aligned."""
    rows = max(1, target_tile_bytes // max(bytes_per_row, 1))
    # Never collapse to a single grid step for non-trivial batches: grid=(1,)
    # disables double-buffering (DMA-in -> compute -> DMA-out fully serial)
    # and gives the v7x megacore nothing to shard across its two TCs.
    if rows >= n and n >= 2 * sub and n * bytes_per_row >= (1 << 20):
        rows = (n + 1) // 2
    if rows >= n or n <= sub:
        return n                          # whole batch in one block (== full dim)
    return max(sub, (rows // sub) * sub)  # sublane multiple, strictly < n


def ddpm_forward(x0, t, eta, alpha_bars, *, target_tile_bytes=4 * 1024 * 1024):
    """noisy = sqrt(a_bar[t]) * x0 + sqrt(1 - a_bar[t]) * eta   (NCHW in/out)."""
    orig_shape = x0.shape
    n = orig_shape[0]
    d = math.prod(orig_shape[1:])

    # Clamp timesteps: out-of-range t would otherwise be a silent bad gather.
    # (Divergence from PyTorch, which would error/garbage on bad t.)
    t = jnp.clip(t.astype(jnp.int32), 0, alpha_bars.shape[0] - 1)

    # Per-sample scales, packed as one (N, 2) f32 array (single DMA stream,
    # half the lane padding vs two (N, 1) inputs).
    a_bar = alpha_bars[t].astype(jnp.float32).reshape(n, 1)
    scales = jnp.concatenate([jnp.sqrt(a_bar), jnp.sqrt(1.0 - a_bar)], axis=1)

    # Lane-dense flat views (contiguous reshape is free); pad D to a multiple
    # of 128 so the output last dim stays a large multiple of 128 (unmasked vst).
    x2 = x0.reshape(n, d)
    e2 = eta.reshape(n, d)
    d_pad = ((d + 127) // 128) * 128
    if d_pad != d:
        pad = ((0, 0), (0, d_pad - d))
        x2 = jnp.pad(x2, pad)
        e2 = jnp.pad(e2, pad)

    bytes_per_row = d_pad * max(x2.dtype.itemsize, e2.dtype.itemsize)
    sub = _sublane_multiple(x2.dtype)
    bt = _rows_per_block(n, bytes_per_row, target_tile_bytes, sub)
    grid = (pl.cdiv(n, bt),)

    out_flat = pl.pallas_call(
        _ddpm_forward_kernel,
        out_shape=jax.ShapeDtypeStruct((n, d_pad), x0.dtype),
        grid=grid,
        in_specs=[
            pl.BlockSpec((bt, 2), lambda i: (i, 0)),      # packed scales
            pl.BlockSpec((bt, d_pad), lambda i: (i, 0)),  # x0 (flattened)
            pl.BlockSpec((bt, d_pad), lambda i: (i, 0)),  # eta (flattened)
        ],
        out_specs=pl.BlockSpec((bt, d_pad), lambda i: (i, 0)),
        compiler_params=pltpu.CompilerParams(
            dimension_semantics=("parallel",),
            vmem_limit_bytes=48 * 1024 * 1024,
        ),
    )(scales, x2, e2)

    if d_pad != d:
        out_flat = out_flat[:, :d]
    return out_flat.reshape(orig_shape)


# TODO(synk): MyDDPM.backward delegates to an arbitrary user-supplied `network`
# (a UNet in the original repo); it is not part of this module's own math and
# is not translated here.


if __name__ == "__main__":
    key = jax.random.PRNGKey(0)
    k_x, k_eta, k_t = jax.random.split(key, 3)

    N, C, H, W = 2, 4, 16, 16
    n_steps = 200

    x0 = jax.random.normal(k_x, (N, C, H, W), dtype=jnp.float32)
    eta = jax.random.normal(k_eta, (N, C, H, W), dtype=jnp.float32)
    t = jax.random.randint(k_t, (N,), 0, n_steps, dtype=jnp.int32)

    _, _, alpha_bars = make_ddpm_schedule(n_steps=n_steps)

    noisy = ddpm_forward(x0, t, eta, alpha_bars)
    noisy = jax.block_until_ready(noisy)

    # Reference check (pure JAX, mirrors the PyTorch forward).
    a_bar_ref = alpha_bars[t].reshape(N, 1, 1, 1)
    ref = jnp.sqrt(a_bar_ref) * x0 + jnp.sqrt(1.0 - a_bar_ref) * eta
    assert jnp.allclose(noisy, ref, atol=1e-6), "mismatch vs reference"

    print("KERNEL_OK")
</pallas_src>

<mosaic_0001>
module attributes {stable_mosaic.version = 11 : i64} {
  func.func @_ddpm_forward_kernel(%arg0: i32, %arg1: memref<2x2xf32, #tpu.memory_space<vmem>>, %arg2: memref<2x1024xf32, #tpu.memory_space<vmem>>, %arg3: memref<2x1024xf32, #tpu.memory_space<vmem>>, %arg4: memref<2x1024xf32, #tpu.memory_space<vmem>>) attributes {dimension_semantics = [#tpu.dimension_semantics<parallel>], iteration_bounds = array<i64: 1>, scalar_prefetch = 0 : i64, scratch_operands = 0 : i64, tpu.core_type = #tpu.core_type<tc>, window_params = [{transform_indices = @transform_0, window_bounds = array<i64: 2, 2>}, {transform_indices = @transform_1, window_bounds = array<i64: 2, 1024>}, {transform_indices = @transform_2, window_bounds = array<i64: 2, 1024>}, {transform_indices = @transform_3, window_bounds = array<i64: 2, 1024>}]} {
    %c0 = arith.constant 0 : index
    %c0_0 = arith.constant 0 : index
    %0 = vector.load %arg1[%c0, %c0_0] : memref<2x2xf32, #tpu.memory_space<vmem>>, vector<2x2xf32>
    %1 = vector.extract_strided_slice %0 {offsets = [0, 0], sizes = [2, 1], strides = [1, 1]} : vector<2x2xf32> to vector<2x1xf32>
    %2 = vector.extract_strided_slice %0 {offsets = [0, 1], sizes = [2, 1], strides = [1, 1]} : vector<2x2xf32> to vector<2x1xf32>
    %c0_1 = arith.constant 0 : index
    %c0_2 = arith.constant 0 : index
    %3 = vector.load %arg2[%c0_1, %c0_2] : memref<2x1024xf32, #tpu.memory_space<vmem>>, vector<2x1024xf32>
    %c0_3 = arith.constant 0 : index
    %c0_4 = arith.constant 0 : index
    %4 = vector.load %arg3[%c0_3, %c0_4] : memref<2x1024xf32, #tpu.memory_space<vmem>>, vector<2x1024xf32>
    %5 = vector.broadcast %1 : vector<2x1xf32> to vector<2x1024xf32>
    %6 = arith.mulf %5, %3 : vector<2x1024xf32>
    %7 = vector.broadcast %2 : vector<2x1xf32> to vector<2x1024xf32>
    %8 = arith.mulf %7, %4 : vector<2x1024xf32>
    %9 = arith.addf %6, %8 : vector<2x1024xf32>
    %c0_5 = arith.constant 0 : index
    %c0_6 = arith.constant 0 : index
    %10 = vector.load %arg4[%c0_5, %c0_6] : memref<2x1024xf32, #tpu.memory_space<vmem>>, vector<2x1024xf32>
    tpu.vector_store %arg4[%c0_5, %c0_6], %9 {strides = array<i32>} : memref<2x1024xf32, #tpu.memory_space<vmem>>, vector<2x1024xf32>,
    return
  }
  func.func @transform_0(%arg0: i32) -> (i32, i32) {
    %c0_i32 = arith.constant 0 : i32
    %c0_i32_0 = arith.constant 0 : i32
    return %arg0, %c0_i32 : i32, i32
  }
  func.func @transform_1(%arg0: i32) -> (i32, i32) {
    %c0_i32 = arith.constant 0 : i32
    %c0_i32_0 = arith.constant 0 : i32
    return %arg0, %c0_i32 : i32, i32
  }
  func.func @transform_2(%arg0: i32) -> (i32, i32) {
    %c0_i32 = arith.constant 0 : i32
    %c0_i32_0 = arith.constant 0 : i32
    return %arg0, %c0_i32 : i32, i32
  }
  func.func @transform_3(%arg0: i32) -> (i32, i32) {
    %c0_i32 = arith.constant 0 : i32
    %c0_i32_0 = arith.constant 0 : i32
    return %arg0, %c0_i32 : i32, i32
  }
}

</mosaic_0001>

<llo_original>
// kernel: tpu_custom_call.1
$region0: #{tpu_custom_call.1}
  #allocation0 [shape = 'u32[]', space=smem, size = 0x4, offset = 0x4, fixed_abs, tag = 'smem constant byte address 0x4 - core index']
  #allocation1 [shape = 'u32[144,128]{1,0:T(1,128)}', space=vmem, size = 0x12000, scoped, tag = 'internal scratch']
  %s0 = inlined_call_operand.hbm [shape: f32[2,2], index: 0, kind: input, shape index: {}]
  %s1 = inlined_call_operand.hbm [shape: f32[2,1024], index: 1, kind: input, shape index: {}]
  %s2 = inlined_call_operand.hbm [shape: f32[2,1024], index: 2, kind: input, shape index: {}]
  %s3 = inlined_call_operand.hbm [shape: f32[2,1024], index: 3, kind: output, shape index: {}]
  %s4 = sld [smem:[#allocation0]]
  $region34: #{tpu_custom_call.1} parent=0
    _
  %s6 = ssub.s32 1, %s4
  %s7 = scalar_select 0, %s6, %s4
  $region1: #{tpu_custom_call.1} parent=0
    #allocation2 [shape = 'u8[1024]{0}', space=vmem, size = 0x400, scoped, tag = 'input window, operand 0, single buffered']
    #allocation3 [shape = 's32[1]{0}', space=sflag, size = 0x4, scoped, tag = 'scoped memory for tpu_custom_call.1']
    #allocation4 [shape = 's32[1]{0}', space=sflag, size = 0x4, scoped, tag = 'scoped memory for tpu_custom_call.1']
    #allocation5 [shape = 'u8[8192]{0}', space=vmem, size = 0x2000, scoped, tag = 'input window, operand 1, single buffered']
    #allocation6 [shape = 's32[1]{0}', space=sflag, size = 0x4, scoped, tag = 'scoped memory for tpu_custom_call.1']
    #allocation7 [shape = 'u8[8192]{0}', space=vmem, size = 0x2000, scoped, tag = 'input window, operand 2, single buffered']
    #allocation8 [shape = 'u8[8192]{0}', space=vmem, size = 0x2000, scoped, tag = 'output window, operand 0, single buffered']
    %8 = vsyncpa [#allocation3], 0
    %9 = vsyncpa [#allocation6], 0
    %10 = vsyncpa [#allocation4], 0
    // Predicated region
    $region2: #{tpu_custom_call.1} parent=1 // pred_check
      _
    $region3: #{tpu_custom_call.1} parent=1 // pred_check_branch
      %12 = sbr.rel (0) target = $region5
    $region4: #{tpu_custom_call.1} parent=1 // pred_region
      %s14 = ssub.s32 32, 32
      %15 = vsyncadd [#allocation3], %s14
      %s17 = sshll.u32 [#allocation2], 4
      %s18 = int_to_ptr.vmem [resolvable:$true] %s17
      %20 = dma.hbm_to_vmem [thread:$0]  %s0, 32, %s18, [#allocation3]
    $region5: #{tpu_custom_call.1} parent=1 // pred_fallthru
      _
    // Predicated region
    $region6: #{tpu_custom_call.1} parent=1 // pred_check
      _
    $region7: #{tpu_custom_call.1} parent=1 // pred_check_branch
      %22 = sbr.rel (0) target = $region9
    $region8: #{tpu_custom_call.1} parent=1 // pred_region
      %s24 = ssub.s32 256, 256
      %25 = vsyncadd [#allocation6], %s24
      %s27 = sshll.u32 [#allocation5], 4
      %s28 = int_to_ptr.vmem [resolvable:$true] %s27
      %30 = dma.hbm_to_vmem [thread:$0]  %s1, 256, %s28, [#allocation6]
    $region9: #{tpu_custom_call.1} parent=1 // pred_fallthru
      _
    // Predicated region
    $region10: #{tpu_custom_call.1} parent=1 // pred_check
      _
    $region11: #{tpu_custom_call.1} parent=1 // pred_check_branch
      %32 = sbr.rel (0) target = $region13
    $region12: #{tpu_custom_call.1} parent=1 // pred_region
      %s34 = ssub.s32 256, 256
      %35 = vsyncadd [#allocation6], %s34
      %s37 = sshll.u32 [#allocation7], 4
      %s38 = int_to_ptr.vmem [resolvable:$true] %s37
      %40 = dma.hbm_to_vmem [thread:$0]  %s2, 256, %s38, [#allocation6]
    $region13: #{tpu_custom_call.1} parent=1 // pred_fallthru
      _
    // Predicated region
    $region14: #{tpu_custom_call.1} parent=1 // pred_check
      _
    $region15: #{tpu_custom_call.1} parent=1 // pred_check_branch
      %42 = sbr.rel (0) target = $region17
    $region16: #{tpu_custom_call.1} parent=1 // pred_region
      %43 = dma.done [#allocation3], 32
    $region17: #{tpu_custom_call.1} parent=1 // pred_fallthru
      _
    // Predicated region
    $region18: #{tpu_custom_call.1} parent=1 // pred_check
      _
    $region19: #{tpu_custom_call.1} parent=1 // pred_check_branch
      %45 = sbr.rel (0) target = $region21
    $region20: #{tpu_custom_call.1} parent=1 // pred_region
      %46 = dma.done [#allocation6], 256
    $region21: #{tpu_custom_call.1} parent=1 // pred_fallthru
      _
    // Predicated region
    $region22: #{tpu_custom_call.1} parent=1 // pred_check
      _
    $region23: #{tpu_custom_call.1} parent=1 // pred_check_branch
      %48 = sbr.rel (0) target = $region25
    $region24: #{tpu_custom_call.1} parent=1 // pred_region
      %49 = dma.done [#allocation6], 256
    $region25: #{tpu_custom_call.1} parent=1 // pred_fallthru
      _
    %v50 = vld [vmem:[#allocation2] sm:$0x3]
    %v51 = vld [vmem:[#allocation5] sm:$0xff]
    %v52 = vld [vmem:[#allocation5 + $0x8] sm:$0xff]
    %v53 = vld [vmem:[#allocation7] sm:$0xff]
    %v54 = vld [vmem:[#allocation7 + $0x8] sm:$0xff]
    %56 = vset.pattern.permute.xlu0 0
    %57 = vperm.xlu0 %56, %v50
    %v58 = vpop.permute.xlu0 %57
    %v62 = vcombine.high %v51, %v51
    %v64 = vunpack.c.l.s4 1983009808
    %v65 = vunpack.c.0.s8 %v64
    %v66 = vlaneseq
    %v67 = vshrl.u32 %v66, 7
    %v68 = vsub.s32 %v65, %v67
    %v69 = vrot.slane %v51, %v68
    %v71 = vunpack.c.l.s4 1983009808
    %v72 = vunpack.c.0.s8 %v71
    %v73 = vlaneseq
    %v74 = vshrl.u32 %v73, 7
    %v75 = vsub.s32 %v72, %v74
    %v76 = vrot.slane %v62, %v75
    %v77 = vcombine.high %v69, %v69
    %v78 = vcombine.high %v76, %v76
    %v79 = vcombine.high %v52, %v52
    %v81 = vunpack.c.l.s4 1983009808
    %v82 = vunpack.c.0.s8 %v81
    %v83 = vlaneseq
    %v84 = vshrl.u32 %v83, 7
    %v85 = vsub.s32 %v82, %v84
    %v86 = vrot.slane %v52, %v85
    %v88 = vunpack.c.l.s4 1983009808
    %v89 = vunpack.c.0.s8 %v88
    %v90 = vlaneseq
    %v91 = vshrl.u32 %v90, 7
    %v92 = vsub.s32 %v89, %v91
    %v93 = vrot.slane %v79, %v92
    %v94 = vcombine.high %v86, %v86
    %v95 = vcombine.high %v93, %v93
    %v104 = vmul.f32 %v58, %v69
    %v105 = vmul.f32 %v58, %v77
    %v106 = vmul.f32 %v58, %v76
    %v107 = vmul.f32 %v58, %v78
    %v108 = vmul.f32 %v58, %v86
    %v109 = vmul.f32 %v58, %v94
    %v110 = vmul.f32 %v58, %v93
    %v111 = vmul.f32 %v58, %v95
    %112 = vset.pattern.permute.xlu0 1
    %113 = vperm.xlu0 %112, %v50
    %v114 = vpop.permute.xlu0 %113
    %v118 = vcombine.high %v53, %v53
    %v120 = vunpack.c.l.s4 1983009808
    %v121 = vunpack.c.0.s8 %v120
    %v122 = vlaneseq
    %v123 = vshrl.u32 %v122, 7
    %v124 = vsub.s32 %v121, %v123
    %v125 = vrot.slane %v53, %v124
    %v127 = vunpack.c.l.s4 1983009808
    %v128 = vunpack.c.0.s8 %v127
    %v129 = vlaneseq
    %v130 = vshrl.u32 %v129, 7
    %v131 = vsub.s32 %v128, %v130
    %v132 = vrot.slane %v118, %v131
    %v133 = vcombine.high %v125, %v125
    %v134 = vcombine.high %v132, %v132
    %v135 = vcombine.high %v54, %v54
    %v137 = vunpack.c.l.s4 1983009808
    %v138 = vunpack.c.0.s8 %v137
    %v139 = vlaneseq
    %v140 = vshrl.u32 %v139, 7
    %v141 = vsub.s32 %v138, %v140
    %v142 = vrot.slane %v54, %v141
    %v144 = vunpack.c.l.s4 1983009808
    %v145 = vunpack.c.0.s8 %v144
    %v146 = vlaneseq
    %v147 = vshrl.u32 %v146, 7
    %v148 = vsub.s32 %v145, %v147
    %v149 = vrot.slane %v135, %v148
    %v150 = vcombine.high %v142, %v142
    %v151 = vcombine.high %v149, %v149
    %v160 = vmul.f32 %v114, %v125
    %v161 = vmul.f32 %v114, %v133
    %v162 = vmul.f32 %v114, %v132
    %v163 = vmul.f32 %v114, %v134
    %v164 = vmul.f32 %v114, %v142
    %v165 = vmul.f32 %v114, %v150
    %v166 = vmul.f32 %v114, %v149
    %v167 = vmul.f32 %v114, %v151
    %v168 = vadd.f32 %v104, %v160
    %v169 = vadd.f32 %v105, %v161
    %v170 = vadd.f32 %v106, %v162
    %v171 = vadd.f32 %v107, %v163
    %v172 = vadd.f32 %v108, %v164
    %v173 = vadd.f32 %v109, %v165
    %v174 = vadd.f32 %v110, %v166
    %v175 = vadd.f32 %v111, %v167
    %v184 = vcombine.low %v168, %v169
    %v185 = vcombine.low %v170, %v171
    %v187 = vunpack.c.l.s4 1983009808
    %v188 = vunpack.c.0.s8 %v187
    %v189 = vlaneseq
    %v190 = vshrl.u32 %v189, 7
    %v191 = vsub.s32 %v188, %v190
    %v192 = vrot.slane %v184, %v191
    %v194 = vunpack.c.l.s4 1983009808
    %v195 = vunpack.c.0.s8 %v194
    %v196 = vlaneseq
    %v197 = vshrl.u32 %v196, 7
    %v198 = vsub.s32 %v195, %v197
    %v199 = vrot.slane %v185, %v198
    %v200 = vcombine.low %v192, %v199
    %v201 = vcombine.low %v172, %v173
    %v202 = vcombine.low %v174, %v175
    %v204 = vunpack.c.l.s4 1983009808
    %v205 = vunpack.c.0.s8 %v204
    %v206 = vlaneseq
    %v207 = vshrl.u32 %v206, 7
    %v208 = vsub.s32 %v205, %v207
    %v209 = vrot.slane %v201, %v208
    %v211 = vunpack.c.l.s4 1983009808
    %v212 = vunpack.c.0.s8 %v211
    %v213 = vlaneseq
    %v214 = vshrl.u32 %v213, 7
    %v215 = vsub.s32 %v212, %v214
    %v216 = vrot.slane %v202, %v215
    %v217 = vcombine.low %v209, %v216
    %220 = vst [vmem:[#allocation8] sm:$0xff] %v200
    %221 = vst [vmem:[#allocation8 + $0x8] sm:$0xff] %v217
    // Predicated region
    $region26: #{tpu_custom_call.1} parent=1 // pred_check
      _
    $region27: #{tpu_custom_call.1} parent=1 // pred_check_branch
      %223 = sbr.rel (0) target = $region29
    $region28: #{tpu_custom_call.1} parent=1 // pred_region
      %s225 = ssub.s32 256, 256
      %226 = vsyncadd [#allocation4], %s225
      %s228 = sshll.u32 [#allocation8], 4
      %s229 = int_to_ptr.vmem [resolvable:$true] %s228
      %231 = dma.vmem_to_hbm [thread:$0]  %s229, 256, %s3, [#allocation4]
    $region29: #{tpu_custom_call.1} parent=1 // pred_fallthru
      _
    // Predicated region
    $region30: #{tpu_custom_call.1} parent=1 // pred_check
      _
    $region31: #{tpu_custom_call.1} parent=1 // pred_check_branch
      %233 = sbr.rel (0) target = $region33
    $region32: #{tpu_custom_call.1} parent=1 // pred_region
      %234 = dma.done [#allocation4], 256
    $region33: #{tpu_custom_call.1} parent=1 // pred_fallthru
      _
    %235 = vsyncpa [#allocation3], 1
    %236 = vsyncpa [#allocation6], 1
    %237 = vsyncpa [#allocation4], 1

</llo_original>
